<compile_context>
chip_gen: v7x
topology: tpu7x:2x2x1
jax: 0.10.0
libtpu: 0.0.40
codegen_flags: <defaults>
</compile_context>

<pallas_src>
import math
import numpy as np
import jax
import jax.numpy as jnp
from jax.experimental import pallas as pl
from jax.experimental.pallas import tpu as pltpu

VERTICAL = 0
HORIZONTAL = 1
LANES = 128
# (2048, 128) f32 block = 1 MiB; double-buffered in + out ≈ 4-5 MiB of VMEM.
DEFAULT_ROW_TILE = 2048


# ----------------------------------------------------------------------------
# Parameter construction (deterministic, no checkpoint load)
# ----------------------------------------------------------------------------
def dct2_ortho_matrix(n: int) -> np.ndarray:
    """Orthonormal DCT-II matrix C (rows = frequencies), matching
    torch_dct.dct(x, norm='ortho')."""
    k = np.arange(n, dtype=np.float64)[:, None]
    m = np.arange(n, dtype=np.float64)[None, :]
    c = np.cos(np.pi * (2.0 * m + 1.0) * k / (2.0 * n))
    scale = np.full((n, 1), np.sqrt(2.0 / n))
    scale[0, 0] = np.sqrt(1.0 / n)
    return (scale * c).astype(np.float32)


def permute_dct_coef_indices(sv: int, sh: int) -> np.ndarray:
    """Flat gather indices reproducing permuteDctCoefs():
    concat(cee, coo, coe, ceo) of a (sv, sh) DCT-coefficient block."""
    idx = np.arange(sv * sh).reshape(sv, sh)
    cee = idx[0::2, 0::2].reshape(-1)
    coo = idx[1::2, 1::2].reshape(-1)
    coe = idx[1::2, 0::2].reshape(-1)
    ceo = idx[0::2, 1::2].reshape(-1)
    return np.concatenate([cee, coo, coe, ceo])


def build_block_dct_matrix(sv: int, sh: int) -> np.ndarray:
    """M such that out_vec = M @ vec(block)  (row-major vec), including the
    2D ortho DCT and the cee/coo/coe/ceo permutation."""
    Cv = dct2_ortho_matrix(sv)
    Ch = dct2_ortho_matrix(sh)
    K = np.kron(Cv, Ch)                      # vec(Cv B Ch^T) = (Cv⊗Ch) vec(B)
    perm = permute_dct_coef_indices(sv, sh)
    return K[perm, :].astype(np.float32)     # (ndecs, ndecs)


# ----------------------------------------------------------------------------
# Pallas kernel: Out = X @ M   (row-tiled, M kept resident in VMEM)
# ----------------------------------------------------------------------------
def _dct_matmul_kernel(x_ref, m_ref, o_ref):
    o_ref[...] = jnp.dot(
        x_ref[...], m_ref[...], preferred_element_type=jnp.float32
    ).astype(o_ref.dtype)


def dct_matmul(x: jax.Array, m: jax.Array, row_tile: int = DEFAULT_ROW_TILE) -> jax.Array:
    """x: (R, K) rows of packed blocks; m: (K, N) transform matrix.

    Small problems (R <= row_tile) run as a single grid step (whole array in
    one block -> zero pipelining overhead).  Large problems are row-tiled and
    the single grid axis is marked "parallel" so it can be sharded across
    TensorCores (megacore / v7x).  A ragged final block is handled by Pallas's
    partial-block masking, so there is no host-side pad/slice pass.
    """
    R, K = x.shape
    K2, N = m.shape
    assert K == K2
    rows = R if R <= row_tile else row_tile
    grid = (pl.cdiv(R, rows),)

    itemsize = jnp.dtype(x.dtype).itemsize
    cost = pl.CostEstimate(
        flops=2 * R * K * N,
        transcendentals=0,
        bytes_accessed=(R * K + R * N) * itemsize
        + K * N * jnp.dtype(m.dtype).itemsize,
    )

    return pl.pallas_call(
        _dct_matmul_kernel,
        out_shape=jax.ShapeDtypeStruct((R, N), x.dtype),
        grid=grid,
        in_specs=[
            pl.BlockSpec((rows, K), lambda i: (i, 0)),
            # Constant block index -> the (<=128,128) transform matrix is
            # DMA'd once and stays resident in VMEM across all grid steps.
            pl.BlockSpec((K, N), lambda i: (0, 0)),
        ],
        out_specs=pl.BlockSpec((rows, N), lambda i: (i, 0)),
        compiler_params=pltpu.CompilerParams(dimension_semantics=("parallel",)),
        cost_estimate=cost,
    )(x, m)


# ----------------------------------------------------------------------------
# Module wrapper (glue only; hot path is in the Pallas kernel)
# ----------------------------------------------------------------------------
class LsunBlockDct2dLayer:
    def __init__(self, name="", stride=(), number_of_components=1):
        self.name = name
        self.stride = list(stride)
        self.num_outputs = number_of_components
        self.description = (
            "Block DCT of size "
            + str(self.stride[VERTICAL]) + "x" + str(self.stride[HORIZONTAL])
        )
        sv = self.stride[VERTICAL]
        sh = self.stride[HORIZONTAL]
        ndecs = sv * sh

        M = build_block_dct_matrix(sv, sh)          # (ndecs, ndecs)
        self._mT = jnp.asarray(M.T)                 # narrow fallback path

        # Lane-dense path: pack G = 128/ndecs blocks per 128-lane row and
        # apply the block-diagonal matrix I_G ⊗ M^T (128 x 128, 64 KiB f32).
        if LANES % ndecs == 0:
            G = LANES // ndecs
            self._group = G
            self._m_big = jnp.asarray(
                np.kron(np.eye(G, dtype=np.float32), M.T).astype(np.float32)
            )
        else:
            # TODO(synk): ndecs not dividing 128 (e.g. 3x3 blocks) falls back
            # to a narrow-lane matmul; a lane-dense variant would need a
            # 128*ndecs-wide packing and is not worth the VMEM.
            self._group = 1
            self._m_big = None

        self._row_tile = DEFAULT_ROW_TILE

    def __call__(self, X: jax.Array):
        nComponents = self.num_outputs
        nSamples = X.shape[0]
        height = X.shape[2]
        width = X.shape[3]
        sv = self.stride[VERTICAL]
        sh = self.stride[HORIZONTAL]
        nrows = int(math.ceil(height / sv))
        ncols = int(math.ceil(width / sh))
        ndecs = sv * sh
        total = nSamples * nComponents * height * width

        if self._m_big is not None and total % LANES == 0:
            # Free row-major reshape to 128-wide lane-dense rows (G blocks/row).
            x_rows = X.reshape(-1, LANES)
            A = dct_matmul(x_rows, self._m_big, row_tile=self._row_tile)
        else:
            # Fallback: narrow-lane matmul (K equals the full array dim, so the
            # (8,128) BlockSpec constraint is satisfied via the full-dim rule).
            x_blocks = X.reshape(-1, ndecs)
            A = dct_matmul(x_blocks, self._mT, row_tile=self._row_tile)

        # Block ordering is preserved by the row-major packing, so this view is
        # identical to the torch .view(nSamples, nComponents, nrows, ncols, ndecs).
        Z = A.reshape(nSamples, nComponents, nrows, ncols, ndecs)

        if nComponents < 2:
            return jnp.squeeze(Z, axis=1)
        else:
            return tuple(
                jnp.squeeze(z, axis=1) for z in jnp.split(Z, nComponents, axis=1)
            )


# ----------------------------------------------------------------------------
# Pure-JAX reference (mirrors the torch code op-for-op) for validation
# ----------------------------------------------------------------------------
def reference_forward(X, stride, nComponents):
    sv, sh = stride[VERTICAL], stride[HORIZONTAL]
    nSamples, _, height, width = X.shape
    nrows = int(math.ceil(height / sv))
    ncols = int(math.ceil(width / sh))
    ndecs = sv * sh
    Cv = jnp.asarray(dct2_ortho_matrix(sv))
    Ch = jnp.asarray(dct2_ortho_matrix(sh))
    B = X.reshape(-1, sv, sh)
    Y = jnp.einsum("ij,bjk,lk->bil", Cv, B, Ch)          # dct_2d(norm='ortho')
    perm = permute_dct_coef_indices(sv, sh)
    A = Y.reshape(-1, ndecs)[:, perm]                     # permuteDctCoefs
    Z = A.reshape(nSamples, nComponents, nrows, ncols, ndecs)
    if nComponents < 2:
        return jnp.squeeze(Z, axis=1)
    return tuple(jnp.squeeze(z, axis=1) for z in jnp.split(Z, nComponents, axis=1))


if __name__ == "__main__":
    key = jax.random.PRNGKey(0)
    k1, k2, k3 = jax.random.split(key, 3)

    # Case 1: single component, 2x2 blocks -> output (2, 8, 8, 4). Single-shot kernel.
    x1 = jax.random.normal(k1, (2, 1, 16, 16), dtype=jnp.float32)
    layer1 = LsunBlockDct2dLayer(name="E0", stride=[2, 2], number_of_components=1)
    out1 = jax.block_until_ready(layer1(x1))
    ref1 = reference_forward(x1, [2, 2], 1)
    assert out1.shape == (2, 8, 8, 4)
    np.testing.assert_allclose(np.asarray(out1), np.asarray(ref1), rtol=1e-5, atol=1e-5)

    # Case 2: 4 components, 4x4 blocks -> tuple of 4 outputs, each (2, 4, 4, 16).
    x2 = jax.random.normal(k2, (2, 4, 16, 16), dtype=jnp.float32)
    layer2 = LsunBlockDct2dLayer(name="E0", stride=[4, 4], number_of_components=4)
    out2 = jax.block_until_ready(layer2(x2))
    ref2 = reference_forward(x2, [4, 4], 4)
    assert len(out2) == 4 and all(o.shape == (2, 4, 4, 16) for o in out2)
    for o, r in zip(out2, ref2):
        np.testing.assert_allclose(np.asarray(o), np.asarray(r), rtol=1e-5, atol=1e-5)

    # Case 3: exercise the multi-step tiled grid with a ragged final block
    # (256 packed rows, row tile forced to 48 -> 6 grid steps, last partial).
    x3 = jax.random.normal(k3, (2, 1, 128, 128), dtype=jnp.float32)
    layer3 = LsunBlockDct2dLayer(name="E0", stride=[2, 2], number_of_components=1)
    layer3._row_tile = 48
    out3 = jax.block_until_ready(layer3(x3))
    ref3 = reference_forward(x3, [2, 2], 1)
    assert out3.shape == (2, 64, 64, 4)
    np.testing.assert_allclose(np.asarray(out3), np.asarray(ref3), rtol=1e-5, atol=1e-5)

    print("KERNEL_OK")
</pallas_src>

<mosaic_0001>
module attributes {stable_mosaic.version = 11 : i64} {
  func.func @_dct_matmul_kernel(%arg0: i32, %arg1: memref<4x128xf32, #tpu.memory_space<vmem>>, %arg2: memref<128x128xf32, #tpu.memory_space<vmem>>, %arg3: memref<4x128xf32, #tpu.memory_space<vmem>>) attributes {dimension_semantics = [#tpu.dimension_semantics<parallel>], iteration_bounds = array<i64: 1>, scalar_prefetch = 0 : i64, scratch_operands = 0 : i64, tpu.core_type = #tpu.core_type<tc>, window_params = [{transform_indices = @transform_0, window_bounds = array<i64: 4, 128>}, {pipeline_mode = #tpu.pipeline_mode<synchronous>, transform_indices = @transform_1, window_bounds = array<i64: 128, 128>}, {transform_indices = @transform_2, window_bounds = array<i64: 4, 128>}]} {
    %c0 = arith.constant 0 : index
    %c0_0 = arith.constant 0 : index
    %0 = vector.load %arg1[%c0, %c0_0] : memref<4x128xf32, #tpu.memory_space<vmem>>, vector<4x128xf32>
    %c0_1 = arith.constant 0 : index
    %c0_2 = arith.constant 0 : index
    %1 = vector.load %arg2[%c0_1, %c0_2] : memref<128x128xf32, #tpu.memory_space<vmem>>, vector<128x128xf32>
    %cst = arith.constant dense<0.000000e+00> : vector<4x128xf32>
    %2 = tpu.matmul %0, %1, %cst {dimension_numbers = #tpu.dot_dimension_numbers<[1], [0], [0], [1], [0, 0, 1, 1], [], []>} : vector<4x128xf32>, vector<128x128xf32>, vector<4x128xf32> -> vector<4x128xf32>
    %c0_3 = arith.constant 0 : index
    %c0_4 = arith.constant 0 : index
    %3 = vector.load %arg3[%c0_3, %c0_4] : memref<4x128xf32, #tpu.memory_space<vmem>>, vector<4x128xf32>
    tpu.vector_store %arg3[%c0_3, %c0_4], %2 {strides = array<i32>} : memref<4x128xf32, #tpu.memory_space<vmem>>, vector<4x128xf32>,
    return
  }
  func.func @transform_0(%arg0: i32) -> (i32, i32) {
    %c0_i32 = arith.constant 0 : i32
    %c0_i32_0 = arith.constant 0 : i32
    return %arg0, %c0_i32 : i32, i32
  }
  func.func @transform_1(%arg0: i32) -> (i32, i32) {
    %c0_i32 = arith.constant 0 : i32
    %c0_i32_0 = arith.constant 0 : i32
    %c0_i32_1 = arith.constant 0 : i32
    return %c0_i32, %c0_i32_0 : i32, i32
  }
  func.func @transform_2(%arg0: i32) -> (i32, i32) {
    %c0_i32 = arith.constant 0 : i32
    %c0_i32_0 = arith.constant 0 : i32
    return %arg0, %c0_i32 : i32, i32
  }
}

</mosaic_0001>

<llo_original>
// kernel: tpu_custom_call.1
$region0: #{tpu_custom_call.1}
  #allocation0 [shape = 'u32[]', space=smem, size = 0x4, offset = 0x4, fixed_abs, tag = 'smem constant byte address 0x4 - core index']
  #allocation1 [shape = 'u32[144,128]{1,0:T(1,128)}', space=vmem, size = 0x12000, scoped, tag = 'internal scratch']
  %s0 = inlined_call_operand.hbm [shape: f32[4,128], index: 0, kind: input, shape index: {}]
  %s1 = inlined_call_operand.hbm [shape: f32[128,128], index: 1, kind: input, shape index: {}]
  %s2 = inlined_call_operand.hbm [shape: f32[4,128], index: 2, kind: output, shape index: {}]
  %s3 = sld [smem:[#allocation0]]
  $region26: #{tpu_custom_call.1} parent=0
    _
  %s5 = ssub.s32 1, %s3
  %s6 = scalar_select 0, %s5, %s3
  $region1: #{tpu_custom_call.1} parent=0
    #allocation2 [shape = 'u8[2048]{0}', space=vmem, size = 0x800, scoped, tag = 'input window, operand 0, single buffered']
    #allocation3 [shape = 's32[1]{0}', space=sflag, size = 0x4, scoped, tag = 'scoped memory for tpu_custom_call.1']
    #allocation4 [shape = 's32[1]{0}', space=sflag, size = 0x4, scoped, tag = 'scoped memory for tpu_custom_call.1']
    #allocation5 [shape = 'u8[65536]{0}', space=vmem, size = 0x10000, scoped, tag = 'input window, operand 1, single buffered']
    #allocation6 [shape = 's32[1]{0}', space=sflag, size = 0x4, scoped, tag = 'scoped memory for tpu_custom_call.1']
    #allocation7 [shape = 'u8[2048]{0}', space=vmem, size = 0x800, scoped, tag = 'output window, operand 0, single buffered']
    %7 = vsyncpa [#allocation3], 0
    %8 = vsyncpa [#allocation6], 0
    %9 = vsyncpa [#allocation4], 0
    // Predicated region
    $region2: #{tpu_custom_call.1} parent=1 // pred_check
      _
    $region3: #{tpu_custom_call.1} parent=1 // pred_check_branch
      %11 = sbr.rel (0) target = $region5
    $region4: #{tpu_custom_call.1} parent=1 // pred_region
      %s13 = ssub.s32 64, 64
      %14 = vsyncadd [#allocation3], %s13
      %s16 = sshll.u32 [#allocation2], 4
      %s17 = int_to_ptr.vmem [resolvable:$true] %s16
      %19 = dma.hbm_to_vmem [thread:$0]  %s0, 64, %s17, [#allocation3]
    $region5: #{tpu_custom_call.1} parent=1 // pred_fallthru
      _
    // Predicated region
    $region6: #{tpu_custom_call.1} parent=1 // pred_check
      _
    $region7: #{tpu_custom_call.1} parent=1 // pred_check_branch
      %21 = sbr.rel (0) target = $region9
    $region8: #{tpu_custom_call.1} parent=1 // pred_region
      %s23 = ssub.s32 2048, 2048
      %24 = vsyncadd [#allocation6], %s23
      %s25 = sshll.u32 [#allocation5], 4
      %s26 = int_to_ptr.vmem [resolvable:$true] %s25
      %31 = dma.hbm_to_vmem [thread:$0]  %s1, 2048, %s26, [#allocation6], 128, 128, 8
    $region9: #{tpu_custom_call.1} parent=1 // pred_fallthru
      _
    // Predicated region
    $region10: #{tpu_custom_call.1} parent=1 // pred_check
      _
    $region11: #{tpu_custom_call.1} parent=1 // pred_check_branch
      %33 = sbr.rel (0) target = $region13
    $region12: #{tpu_custom_call.1} parent=1 // pred_region
      %34 = dma.done [#allocation3], 64
    $region13: #{tpu_custom_call.1} parent=1 // pred_fallthru
      _
    // Predicated region
    $region14: #{tpu_custom_call.1} parent=1 // pred_check
      _
    $region15: #{tpu_custom_call.1} parent=1 // pred_check_branch
      %36 = sbr.rel (0) target = $region17
    $region16: #{tpu_custom_call.1} parent=1 // pred_region
      %37 = dma.done [#allocation6], 2048
    $region17: #{tpu_custom_call.1} parent=1 // pred_fallthru
      _
    %v38 = vld [vmem:[#allocation2] sm:$0xf]
    %v39 = vld [vmem:[#allocation5] sm:$0xff]
    %v40 = vld [vmem:[#allocation5 + $0x8] sm:$0xff]
    %v41 = vld [vmem:[#allocation5 + $0x10] sm:$0xff]
    %v42 = vld [vmem:[#allocation5 + $0x18] sm:$0xff]
    %v43 = vld [vmem:[#allocation5 + $0x20] sm:$0xff]
    %v44 = vld [vmem:[#allocation5 + $0x28] sm:$0xff]
    %v45 = vld [vmem:[#allocation5 + $0x30] sm:$0xff]
    %v46 = vld [vmem:[#allocation5 + $0x38] sm:$0xff]
    %v47 = vld [vmem:[#allocation5 + $0x40] sm:$0xff]
    %v48 = vld [vmem:[#allocation5 + $0x48] sm:$0xff]
    %v49 = vld [vmem:[#allocation5 + $0x50] sm:$0xff]
    %v50 = vld [vmem:[#allocation5 + $0x58] sm:$0xff]
    %v51 = vld [vmem:[#allocation5 + $0x60] sm:$0xff]
    %v52 = vld [vmem:[#allocation5 + $0x68] sm:$0xff]
    %v53 = vld [vmem:[#allocation5 + $0x70] sm:$0xff]
    %v54 = vld [vmem:[#allocation5 + $0x78] sm:$0xff]
    %55 = vmatprep.subr.mxu0 0.0
    %56 = vmatpush1.msra.mxu0 %v39
    %57 = vmatprep.subr.mxu0 0.0
    %58 = vmatpush1.msra.mxu0 %v40
    %59 = vmatprep.subr.mxu0 0.0
    %60 = vmatpush1.msra.mxu0 %v41
    %61 = vmatprep.subr.mxu0 0.0
    %62 = vmatpush1.msra.mxu0 %v42
    %63 = vmatprep.subr.mxu0 0.0
    %64 = vmatpush1.msra.mxu0 %v43
    %65 = vmatprep.subr.mxu0 0.0
    %66 = vmatpush1.msra.mxu0 %v44
    %67 = vmatprep.subr.mxu0 0.0
    %68 = vmatpush1.msra.mxu0 %v45
    %69 = vmatprep.subr.mxu0 0.0
    %70 = vmatpush1.msra.mxu0 %v46
    %71 = vmatprep.subr.mxu0 0.0
    %72 = vmatpush1.msra.mxu0 %v47
    %73 = vmatprep.subr.mxu0 0.0
    %74 = vmatpush1.msra.mxu0 %v48
    %75 = vmatprep.subr.mxu0 0.0
    %76 = vmatpush1.msra.mxu0 %v49
    %77 = vmatprep.subr.mxu0 0.0
    %78 = vmatpush1.msra.mxu0 %v50
    %79 = vmatprep.subr.mxu0 0.0
    %80 = vmatpush1.msra.mxu0 %v51
    %81 = vmatprep.subr.mxu0 0.0
    %82 = vmatpush1.msra.mxu0 %v52
    %83 = vmatprep.subr.mxu0 0.0
    %84 = vmatpush1.msra.mxu0 %v53
    %85 = vmatprep.subr.mxu0 0.0
    %86 = vmatpush1.msra.mxu0 %v54
    %87 = vmatprep.subr.mxu0 0.0
    %88 = vmatpush1.msra.mxu0 0.0
    %89 = vmatprep.subr.mxu0 0.0
    %90 = vmatpush1.msra.mxu0 0.0
    %91 = vmatprep.subr.mxu0 0.0
    %92 = vmatpush1.msra.mxu0 0.0
    %93 = vmatprep.subr.mxu0 0.0
    %94 = vmatpush1.msra.mxu0 0.0
    %95 = vmatprep.subr.mxu0 0.0
    %96 = vmatpush1.msra.mxu0 0.0
    %97 = vmatprep.subr.mxu0 0.0
    %98 = vmatpush1.msra.mxu0 0.0
    %99 = vmatprep.subr.mxu0 0.0
    %100 = vmatpush1.msra.mxu0 0.0
    %101 = vmatprep.subr.mxu0 0.0
    %102 = vmatpush1.msra.mxu0 0.0
    %103 = vmatprep.subr.mxu0 0.0
    %104 = vmatpush1.msra.mxu0 0.0
    %105 = vmatprep.subr.mxu0 0.0
    %106 = vmatpush1.msra.mxu0 0.0
    %107 = vmatprep.subr.mxu0 0.0
    %108 = vmatpush1.msra.mxu0 0.0
    %109 = vmatprep.subr.mxu0 0.0
    %110 = vmatpush1.msra.mxu0 0.0
    %111 = vmatprep.subr.mxu0 0.0
    %112 = vmatpush1.msra.mxu0 0.0
    %113 = vmatprep.subr.mxu0 0.0
    %114 = vmatpush1.msra.mxu0 0.0
    %115 = vmatprep.subr.mxu0 0.0
    %116 = vmatpush1.msra.mxu0 0.0
    %117 = vmatprep.subr.mxu0 0.0
    %118 = vmatpush1.msra.mxu0 0.0
    %119 = vmatprep.mubr.f32.mxu0 0.0
    %120 = vmatmul.mubr.f32.gmra.mrb[0].mxu0 %v38
    %v121 = vpop.f32.mrb[0].mxu0
    %v122 = vadd.f32 0.0, %v121
    %v123 = vpop.f32.mrb[0].mxu0
    %124 = vdwg.mxu0
    %125 = vst [vmem:[#allocation7] sm:$0xf] %v122
    // Predicated region
    $region18: #{tpu_custom_call.1} parent=1 // pred_check
      _
    $region19: #{tpu_custom_call.1} parent=1 // pred_check_branch
      %127 = sbr.rel (0) target = $region21
    $region20: #{tpu_custom_call.1} parent=1 // pred_region
      %s129 = ssub.s32 64, 64
      %130 = vsyncadd [#allocation4], %s129
      %s132 = sshll.u32 [#allocation7], 4
      %s133 = int_to_ptr.vmem [resolvable:$true] %s132
      %135 = dma.vmem_to_hbm [thread:$0]  %s133, 64, %s2, [#allocation4]
    $region21: #{tpu_custom_call.1} parent=1 // pred_fallthru
      _
    // Predicated region
    $region22: #{tpu_custom_call.1} parent=1 // pred_check
      _
    $region23: #{tpu_custom_call.1} parent=1 // pred_check_branch
      %137 = sbr.rel (0) target = $region25
    $region24: #{tpu_custom_call.1} parent=1 // pred_region
      %138 = dma.done [#allocation4], 64
    $region25: #{tpu_custom_call.1} parent=1 // pred_fallthru
      _
    %139 = vsyncpa [#allocation3], 1
    %140 = vsyncpa [#allocation6], 1
    %141 = vsyncpa [#allocation4], 1

</llo_original>
